<compile_context>
chip_gen: v5e
topology: v5e:2x2
jax: 0.10.0
libtpu: 0.0.40
codegen_flags: <defaults>
</compile_context>

<pallas_src>
import functools

import jax
import jax.numpy as jnp
from jax import lax
from jax.experimental import pallas as pl
from jax.experimental.pallas import tpu as pltpu


_VMEM_BUDGET = 20 * 1024 * 1024   # target for double-buffered (in + out) blocks/step
_VMEM_LIMIT = 48 * 1024 * 1024    # explicit scoped-VMEM limit (< v7x 64 MiB physical)


def _pair(v):
    return (v, v) if isinstance(v, int) else tuple(v)


def _maxpool_kernel(x_ref, o_ref, *, kh, kw, sh, sw, dh, dw, to, wo, c):
    """x_ref: (sh, sw, Hb_blk, Wb*C) stride-phase planes with channels folded
    into the lane axis.  o_ref: (to, Wo*C).  Window tap (i, j) lives at phase
    ((i*dh) % sh, (j*dw) % sw) with row / lane offset ((i*dh)//sh, ((j*dw)//sw)*C),
    so every tap is a contiguous static slice (no strided loads).  Taps are
    re-sliced from the ref each time (no plane caching -> no vreg spills);
    the kh*kw-way max reduces on the VPU."""
    acc = None
    for i in range(kh):
        a, ho0 = (i * dh) % sh, (i * dh) // sh
        for j in range(kw):
            b, wo0 = (j * dw) % sw, (j * dw) // sw
            v = x_ref[a, b, ho0:ho0 + to, wo0 * c:(wo0 + wo) * c]
            acc = v if acc is None else jnp.maximum(acc, v)
    # NOTE: if shifted (wo0>0) lane slices ever show up as XLU copy overhead,
    # pre-shift once per phase with pltpu.roll (XLU slot is idle here).
    o_ref[...] = acc.astype(o_ref.dtype)


def padded_max_pool2d(x, kernel_size, stride=None, padding=(0, 0, 0, 0), dilation=1):
    """x: (N, C, H, W) NCHW like the PyTorch module.  Returns NCHW output."""
    kh, kw = _pair(kernel_size)
    sh, sw = _pair(stride) if stride is not None else (kh, kw)
    dh, dw = _pair(dilation)
    pad_l, pad_r, pad_t, pad_b = padding
    N, C, H, W = x.shape
    Hp, Wp = H + pad_t + pad_b, W + pad_l + pad_r
    Ho = (Hp - dh * (kh - 1) - 1) // sh + 1
    Wo = (Wp - dw * (kw - 1) - 1) // sw + 1
    Hb, Wb = -(-Hp // sh), -(-Wp // sw)
    itemsize = jnp.dtype(x.dtype).itemsize

    # ---- single pad + single combined layout transform ----------------------
    # Replicate padding (F.pad mode='replicate') and stride-alignment padding in
    # one jnp.pad (identity for the standard (0,0,0,0) pool); the alignment
    # cells are never read by the kernel.
    xp = jnp.pad(
        x, ((0, 0), (0, 0),
            (pad_t, pad_b + Hb * sh - Hp),
            (pad_l, pad_r + Wb * sw - Wp)),
        mode="edge")
    # One transpose does NCHW->channels-last AND the stride space-to-depth:
    #   xr[n, a, b, hb, wb*C + c] = xp[n, c, hb*sh + a, wb*sw + b]
    # so every pooling tap is a contiguous slice and the kernel's last dim is
    # the lane-dense Wb*C slab.  With allow_input_fusion below, XLA is allowed
    # to fold this producer chain into the Pallas input DMA.
    xr = (xp.reshape(N, C, Hb, sh, Wb, sw)
            .transpose(0, 3, 5, 2, 4, 1)
            .reshape(N, sh, sw, Hb, Wb * C))

    # ---- VMEM-budgeted output-row tiling -------------------------------------
    halo = ((kh - 1) * dh) // sh           # extra plane rows a tap can reach into

    def step_bytes(rows):                  # input block + output block per grid step
        return (sh * sw * Wb * C * rows + Wo * C * rows) * itemsize

    To, num_t = Ho, 1
    if halo == 0 and 2 * step_bytes(Ho) > _VMEM_BUDGET:
        cands = [d for d in range(8, Ho, 8) if Ho % d == 0]   # (8,128)-legal row tiles
        if cands:
            fitting = [d for d in cands if 2 * step_bytes(d) <= _VMEM_BUDGET]
            To = max(fitting) if fitting else min(cands)
            num_t = Ho // To
    # TODO(synk): when kernel*dilation > stride (halo > 0) row tiles would need an
    # overlap of `halo` plane rows, which Blocked BlockSpecs cannot express; those
    # pools (2x2/s1, 3x3/s2) run on small feature maps in darknet, so a single
    # whole-image block is kept there.
    hb_blk = To if num_t > 1 else Hb

    kernel = functools.partial(_maxpool_kernel, kh=kh, kw=kw, sh=sh, sw=sw,
                               dh=dh, dw=dw, to=To, wo=Wo, c=C)
    # Advisory cost of the custom call itself (wrapper layout ops are separate HLO).
    cost = pl.CostEstimate(
        flops=N * Ho * Wo * C * kh * kw,          # one compare per window tap
        transcendentals=0,
        bytes_accessed=(xr.size + N * Ho * Wo * C) * itemsize)

    out = pl.pallas_call(
        kernel,
        out_shape=jax.ShapeDtypeStruct((N, Ho, Wo * C), x.dtype),
        grid_spec=pltpu.PrefetchScalarGridSpec(
            num_scalar_prefetch=0,
            grid=(N, num_t),                       # N * num_t fully-parallel steps
            in_specs=[pl.BlockSpec((None, sh, sw, hb_blk, Wb * C),
                                   lambda n, t: (n, 0, 0, t, 0))],
            out_specs=pl.BlockSpec((None, To, Wo * C),
                                   lambda n, t: (n, t, 0)),
        ),
        compiler_params=pltpu.CompilerParams(
            dimension_semantics=("parallel", "parallel"),   # megacore splits N*num_t
            vmem_limit_bytes=_VMEM_LIMIT,
            allow_input_fusion=[True]),   # permit fusing the pad/transpose producer
        cost_estimate=cost,
    )(xr)
    # NOTE: if profiling shows exposed DMA with many small row tiles, sweep the
    # input pipeline depth via pl.BlockSpec(..., pipeline_mode=pl.Buffered(3)).

    # Split lanes back into (Wo, C) (free reshape of the minor dim), then NCHW.
    return out.reshape(N, Ho, Wo, C).transpose(0, 3, 1, 2)


def _reference(x, kernel_size, stride=None, padding=(0, 0, 0, 0), dilation=1):
    kh, kw = _pair(kernel_size)
    sh, sw = _pair(stride) if stride is not None else (kh, kw)
    dh, dw = _pair(dilation)
    pad_l, pad_r, pad_t, pad_b = padding
    xp = jnp.pad(x, ((0, 0), (0, 0), (pad_t, pad_b), (pad_l, pad_r)), mode="edge")
    return lax.reduce_window(xp, -jnp.inf, lax.max,
                             window_dimensions=(1, 1, kh, kw),
                             window_strides=(1, 1, sh, sw),
                             padding="VALID",
                             window_dilation=(1, 1, dh, dw))


if __name__ == "__main__":
    key = jax.random.PRNGKey(0)
    x = jax.random.normal(key, (2, 4, 16, 16), dtype=jnp.float32)

    configs = [
        # standard darknet downsampling pool
        dict(kernel_size=2, stride=2, padding=(0, 0, 0, 0), dilation=1),
        # yolo-tiny style: stride 1 with replicate padding (right/bottom)
        dict(kernel_size=2, stride=1, padding=(0, 1, 0, 1), dilation=1),
        # 3x3 pool exercising taps that cross stride-phase blocks
        dict(kernel_size=3, stride=2, padding=(1, 1, 1, 1), dilation=1),
    ]

    for cfg in configs:
        out = jax.block_until_ready(padded_max_pool2d(x, **cfg))
        ref = _reference(x, **cfg)
        assert out.shape == ref.shape, (cfg, out.shape, ref.shape)
        assert jnp.allclose(out, ref), cfg

    print("KERNEL_OK")
</pallas_src>

<mosaic_0001>
module attributes {stable_mosaic.version = 11 : i64} {
  func.func @_maxpool_kernel(%arg0: i32, %arg1: i32, %arg2: memref<1x2x2x8x32xf32, #tpu.memory_space<vmem>>, %arg3: memref<1x8x32xf32, #tpu.memory_space<vmem>>) attributes {dimension_semantics = [#tpu.dimension_semantics<parallel>, #tpu.dimension_semantics<parallel>], iteration_bounds = array<i64: 2, 1>, scalar_prefetch = 0 : i64, scratch_operands = 0 : i64, tpu.core_type = #tpu.core_type<tc>, window_params = [{transform_indices = @transform_0, window_bounds = array<i64: 1, 2, 2, 8, 32>}, {transform_indices = @transform_1, window_bounds = array<i64: 1, 8, 32>}]} {
    %c0 = arith.constant 0 : index
    %c0_0 = arith.constant 0 : index
    %c0_1 = arith.constant 0 : index
    %c0_2 = arith.constant 0 : index
    %c0_3 = arith.constant 0 : index
    %0 = vector.load %arg2[%c0, %c0_0, %c0_1, %c0_2, %c0_3] : memref<1x2x2x8x32xf32, #tpu.memory_space<vmem>>, vector<1x1x1x8x32xf32>
    %1 = vector.shape_cast %0 : vector<1x1x1x8x32xf32> to vector<8x32xf32>
    %c0_4 = arith.constant 0 : index
    %c0_5 = arith.constant 0 : index
    %c1 = arith.constant 1 : index
    %c0_6 = arith.constant 0 : index
    %c0_7 = arith.constant 0 : index
    %2 = vector.load %arg2[%c0_4, %c0_5, %c1, %c0_6, %c0_7] : memref<1x2x2x8x32xf32, #tpu.memory_space<vmem>>, vector<1x1x1x8x32xf32>
    %3 = vector.shape_cast %2 : vector<1x1x1x8x32xf32> to vector<8x32xf32>
    %4 = arith.maximumf %1, %3 : vector<8x32xf32>
    %c0_8 = arith.constant 0 : index
    %c1_9 = arith.constant 1 : index
    %c0_10 = arith.constant 0 : index
    %c0_11 = arith.constant 0 : index
    %c0_12 = arith.constant 0 : index
    %5 = vector.load %arg2[%c0_8, %c1_9, %c0_10, %c0_11, %c0_12] : memref<1x2x2x8x32xf32, #tpu.memory_space<vmem>>, vector<1x1x1x8x32xf32>
    %6 = vector.shape_cast %5 : vector<1x1x1x8x32xf32> to vector<8x32xf32>
    %7 = arith.maximumf %4, %6 : vector<8x32xf32>
    %c0_13 = arith.constant 0 : index
    %c1_14 = arith.constant 1 : index
    %c1_15 = arith.constant 1 : index
    %c0_16 = arith.constant 0 : index
    %c0_17 = arith.constant 0 : index
    %8 = vector.load %arg2[%c0_13, %c1_14, %c1_15, %c0_16, %c0_17] : memref<1x2x2x8x32xf32, #tpu.memory_space<vmem>>, vector<1x1x1x8x32xf32>
    %9 = vector.shape_cast %8 : vector<1x1x1x8x32xf32> to vector<8x32xf32>
    %10 = arith.maximumf %7, %9 : vector<8x32xf32>
    %c0_18 = arith.constant 0 : index
    %c0_19 = arith.constant 0 : index
    %c0_20 = arith.constant 0 : index
    %11 = vector.load %arg3[%c0_18, %c0_19, %c0_20] : memref<1x8x32xf32, #tpu.memory_space<vmem>>, vector<1x8x32xf32>
    %12 = vector.shape_cast %11 : vector<1x8x32xf32> to vector<8x32xf32>
    %13 = vector.shape_cast %10 : vector<8x32xf32> to vector<1x8x32xf32>
    tpu.vector_store %arg3[%c0_18, %c0_19, %c0_20], %13 {strides = array<i32>} : memref<1x8x32xf32, #tpu.memory_space<vmem>>, vector<1x8x32xf32>,
    return
  }
  func.func @transform_0(%arg0: i32, %arg1: i32) -> (i32, i32, i32, i32, i32) {
    %c0_i32 = arith.constant 0 : i32
    %c0_i32_0 = arith.constant 0 : i32
    %c0_i32_1 = arith.constant 0 : i32
    %c0_i32_2 = arith.constant 0 : i32
    return %arg0, %c0_i32, %c0_i32_0, %arg1, %c0_i32_1 : i32, i32, i32, i32, i32
  }
  func.func @transform_1(%arg0: i32, %arg1: i32) -> (i32, i32, i32) {
    %c0_i32 = arith.constant 0 : i32
    %c0_i32_0 = arith.constant 0 : i32
    return %arg0, %arg1, %c0_i32 : i32, i32, i32
  }
}

</mosaic_0001>

<llo_original>
// kernel: tpu_custom_call.1
$region0: #{tpu_custom_call.1}
  #allocation0 [shape = 'u32[]', space=smem, size = 0x4, offset = 0x4, fixed_abs, tag = 'smem constant byte address 0x4 - core index']
  #allocation1 [shape = 'u32[72,128]{1,0:T(1,128)}', space=vmem, size = 0x9000, scoped, tag = 'internal scratch']
  %s0 = inlined_call_operand.hbm [shape: f32[2,2,2,8,32], index: 0, kind: input, shape index: {}]
  %s1 = inlined_call_operand.hbm [shape: f32[2,8,32], index: 1, kind: output, shape index: {}]
  %s2 = sld [smem:[#allocation0]]
  $region41: #{tpu_custom_call.1} parent=0
    _
  %s4 = ssub.s32 1, %s2
  %s5 = scalar_select 0, %s4, %s2
  $region1: #{tpu_custom_call.1} parent=0
    #allocation2 [shape = 'u8[32768]{0}', space=vmem, size = 0x8000, scoped, tag = 'input window, operand 0']
    #allocation3 [shape = 's32[2]{0}', space=sflag, size = 0x8, scoped, tag = 'scoped memory for tpu_custom_call.1']
    #allocation4 [shape = 's32[2]{0}', space=sflag, size = 0x8, scoped, tag = 'scoped memory for tpu_custom_call.1']
    #allocation5 [shape = 'u8[8192]{0}', space=vmem, size = 0x2000, scoped, tag = 'output window, operand 0']
    %6 = vsyncpa [#allocation3], 0
    %s7 = scalar_lea.sflag [#allocation3], 1
    %8 = vsyncpa %s7, 0
    %9 = vsyncpa [#allocation4], 0
    %s10 = scalar_lea.sflag [#allocation4], 1
    %11 = vsyncpa %s10, 0
    loop: start=0, step=1, limit=4
    $region2: #{tpu_custom_call.1} parent=1 // loop_pre_header
      _
    $region3: #{tpu_custom_call.1} parent=1 // loop_header
      %s13 = sphi 0, %s17
      %p14 = scmp.ge.s32.totalorder %s13, 4
      %s20 = sphi 0, %s32
      %s21 = sphi 0, %s28
      %s22 = sphi 0, %s20
      %s23 = sphi 0, %s21
      %s24 = sphi 0, %s22
      %s25 = sphi 0, %s23
      %s37 = sphi 0, %s39
      %s40 = sphi 0, %s37
      %s41 = sphi 0, %s40
      %s57 = sphi 0, %s41
      %s65 = sphi 0, %s67
      %s68 = sphi 0, %s65
      %s69 = sphi 0, %s68
      %s85 = sphi 0, %s69
    $region4: #{tpu_custom_call.1} parent=1 // loop_header_branch
      %16 = sbr.rel (%p14) target = $region8
    $region5: #{tpu_custom_call.1} parent=1 // loop_body
      %s18 = ssub.s32 %s13, 1
      %s19 = ssub.s32 %s13, 2
      %s26 = sadd.s32 1, %s21
      %p27 = scmp.ge.s32.totalorder %s26, 1
      %s28 = scalar_select %p27, 0, %s26
      %s29 = sadd.s32 1, %s20
      %s30 = scalar_select %p27, %s29, %s20
      %p31 = scmp.ge.s32.totalorder %s30, 2
      %s32 = scalar_select %p31, 0, %s30
      %s33 = ssub.s32 %s20, %s32
      %s34 = ssub.s32 %s21, %s28
      %s35 = sor.u32 %s33, %s34
      %p36 = scmp.eq.s32.totalorder %s35, 0
      %s38 = sadd.s32 %s37, 1
      %s39 = scalar_select %p36, %s37, %s38
      %p42 = pneg %p36
      %p43 = scmp.eq.s32.totalorder %s13, 1
      %p44 = por %p42, %p43
      %p45 = scmp.ne.s32.totalorder %s37, %s40
      %p46 = scmp.eq.s32.totalorder %s13, 0
      %p47 = por %p45, %p46
      %p48 = scmp.ne.s32.totalorder %s37, %s40
      %p49 = scmp.eq.s32.totalorder %s18, 1
      %p50 = por %p48, %p49
      %p51 = scmp.ne.s32.totalorder %s40, %s41
      %p52 = scmp.eq.s32.totalorder %s18, 0
      %p53 = por %p51, %p52
      %p54 = scmp.ne.s32.totalorder %s40, %s41
      %p55 = scmp.eq.s32.totalorder %s19, 1
      %p56 = por %p54, %p55
      %p58 = scmp.ne.s32.totalorder %s41, %s57
      %p59 = scmp.eq.s32.totalorder %s19, 0
      %p60 = por %p58, %p59
      %s61 = ssub.s32 %s20, %s32
      %s62 = ssub.s32 %s21, %s28
      %s63 = sor.u32 %s61, %s62
      %p64 = scmp.eq.s32.totalorder %s63, 0
      %s66 = sadd.s32 %s65, 1
      %s67 = scalar_select %p64, %s65, %s66
      %p70 = pneg %p64
      %p71 = scmp.eq.s32.totalorder %s13, 1
      %p72 = por %p70, %p71
      %p73 = scmp.ne.s32.totalorder %s65, %s68
      %p74 = scmp.eq.s32.totalorder %s13, 0
      %p75 = por %p73, %p74
      %p76 = scmp.ne.s32.totalorder %s65, %s68
      %p77 = scmp.eq.s32.totalorder %s18, 1
      %p78 = por %p76, %p77
      %p79 = scmp.ne.s32.totalorder %s68, %s69
      %p80 = scmp.eq.s32.totalorder %s18, 0
      %p81 = por %p79, %p80
      %p82 = scmp.ne.s32.totalorder %s68, %s69
      %p83 = scmp.eq.s32.totalorder %s19, 1
      %p84 = por %p82, %p83
      %p86 = scmp.ne.s32.totalorder %s69, %s85
      %p87 = scmp.eq.s32.totalorder %s19, 0
      %p88 = por %p86, %p87
      %p89 = scmp.le.s32.totalorder 1, %s13
      %p90 = scmp.lt.s32.totalorder %s13, 3
      %p91 = pnand %p89, %p90
      %p92 = pneg %p91
      // Predicated region
      $region9: #{tpu_custom_call.1} parent=5 // pred_check
        _
      $region10: #{tpu_custom_call.1} parent=5 // pred_check_branch
        %94 = sbr.rel (%p91) target = $region12
      $region11: #{tpu_custom_call.1} parent=5 // pred_region
        %s95 = ssub.s32 %s13, 1
      $region12: #{tpu_custom_call.1} parent=5 // pred_fallthru
        _
      %p96 = scmp.lt.s32.totalorder %s13, 2
      // Predicated region
      $region13: #{tpu_custom_call.1} parent=5 // pred_check
        %p97 = pneg %p96
      $region14: #{tpu_custom_call.1} parent=5 // pred_check_branch
        %99 = sbr.rel (%p97) target = $region16
      $region15: #{tpu_custom_call.1} parent=5 // pred_region
        // Predicated region
        $region17: #{tpu_custom_call.1} parent=15 // pred_check
          %p100 = pneg %p47
        $region18: #{tpu_custom_call.1} parent=15 // pred_check_branch
          %102 = sbr.rel (%p100) target = $region20
        $region19: #{tpu_custom_call.1} parent=15 // pred_region
          %s103 = sand.u32 %s37, 1
          %s104 = scalar_lea.sflag [#allocation3], %s103
          %s105 = sand.u32 %s37, 1
          %s106 = smul.addr %s105, 32
          %s107 = scalar_lea.vmem [#allocation2], %s106
          %109 = vsyncadd %s104, 0
          %s110 = smul.addr %s20, 4
          %s111 = sadd.s32 %s21, %s110
          %s112 = smul.addr %s111, 8
          %s113 = scalar_lea.hbm %s0, %s112
          %s114 = sshll.u32 %s113, 4
          %s115 = int_to_ptr.hbm [resolvable:$true] %s114
          %s116 = sshll.u32 %s107, 4
          %s117 = int_to_ptr.vmem [resolvable:$true] %s116
          %122 = dma.hbm_to_vmem [thread:$0]  %s115, 512, %s117, %s104, 128, 128, 8
        $region20: #{tpu_custom_call.1} parent=15 // pred_fallthru
          _
      $region16: #{tpu_custom_call.1} parent=5 // pred_fallthru
        _
      %p123 = scmp.le.s32.totalorder 1, %s13
      %p124 = scmp.lt.s32.totalorder %s13, 3
      %p125 = pnand %p123, %p124
      %p126 = pneg %p125
      // Predicated region
      $region21: #{tpu_custom_call.1} parent=5 // pred_check
        _
      $region22: #{tpu_custom_call.1} parent=5 // pred_check_branch
        %128 = sbr.rel (%p125) target = $region24
      $region23: #{tpu_custom_call.1} parent=5 // pred_region
        %s129 = ssub.s32 %s13, 1
        %s130 = sand.u32 %s40, 1
        %s131 = scalar_lea.sflag [#allocation3], %s130
        %s132 = sand.u32 %s40, 1
        %s133 = smul.addr %s132, 32
        %s134 = scalar_lea.vmem [#allocation2], %s133
        // Predicated region
        $region25: #{tpu_custom_call.1} parent=23 // pred_check
          %p135 = pneg %p53
        $region26: #{tpu_custom_call.1} parent=23 // pred_check_branch
          %137 = sbr.rel (%p135) target = $region28
        $region27: #{tpu_custom_call.1} parent=23 // pred_region
          %139 = dma.done %s131, 512
        $region28: #{tpu_custom_call.1} parent=23 // pred_fallthru
          _
        %s140 = sand.u32 %s40, 1
        %s141 = scalar_lea.sflag [#allocation3], %s140
        %s142 = sand.u32 %s40, 1
        %s143 = smul.addr %s142, 32
        %s144 = scalar_lea.vmem [#allocation2], %s143
        %p145 = pneg %p53
        %p146 = pneg %p50
        %p147 = pneg %p81
        %p148 = pneg %p78
        %s149 = sand.u32 %s68, 1
        %s150 = scalar_lea.sflag [#allocation4], %s149
        %s151 = sand.u32 %s68, 1
        %s152 = smul.addr %s151, 8
        %s153 = scalar_lea.vmem [#allocation5], %s152
        %v154 = vld [vmem:[%s134] sm:$0xff]
        %s155 = scalar_lea.vmem %s134, 8 [#allocation2]
        %v156 = vld [vmem:[%s155] sm:$0xff]
        %v157 = vmax.f32 %v154, %v156
        %s158 = scalar_lea.vmem %s134, 16 [#allocation2]
        %v159 = vld [vmem:[%s158] sm:$0xff]
        %v160 = vmax.f32 %v157, %v159
        %s161 = scalar_lea.vmem %s134, 24 [#allocation2]
        %v162 = vld [vmem:[%s161] sm:$0xff]
        %v163 = vmax.f32 %v160, %v162
        %vm164 = vcmask 261120
        %165 = vst.msk [vmem:[%s153] sm:$0xff] %vm164, %v163
        %s166 = sand.u32 %s68, 1
        %s167 = scalar_lea.sflag [#allocation4], %s166
        %s168 = sand.u32 %s68, 1
        %s169 = smul.addr %s168, 8
        %s170 = scalar_lea.vmem [#allocation5], %s169
        // Predicated region
        $region29: #{tpu_custom_call.1} parent=23 // pred_check
          %p171 = pneg %p78
        $region30: #{tpu_custom_call.1} parent=23 // pred_check_branch
          %173 = sbr.rel (%p171) target = $region32
        $region31: #{tpu_custom_call.1} parent=23 // pred_region
          %175 = vsyncadd %s167, 0
          %s176 = sadd.s32 %s23, %s22
          %s177 = smul.addr %s176, 8
          %s178 = scalar_lea.hbm %s1, %s177
          %s180 = sshll.u32 %s170, 4
          %s181 = int_to_ptr.vmem [resolvable:$true] %s180
          %s182 = sshll.u32 %s178, 4
          %s183 = int_to_ptr.hbm [resolvable:$true] %s182
          %185 = dma.vmem_to_hbm [thread:$0]  %s181, 128, %s183, %s167
        $region32: #{tpu_custom_call.1} parent=23 // pred_fallthru
          _
      $region24: #{tpu_custom_call.1} parent=5 // pred_fallthru
        _
      %p186 = scmp.le.s32.totalorder 2, %s13
      // Predicated region
      $region33: #{tpu_custom_call.1} parent=5 // pred_check
        %p187 = pneg %p186
      $region34: #{tpu_custom_call.1} parent=5 // pred_check_branch
        %189 = sbr.rel (%p187) target = $region36
      $region35: #{tpu_custom_call.1} parent=5 // pred_region
        %s190 = ssub.s32 %s13, 2
        // Predicated region
        $region37: #{tpu_custom_call.1} parent=35 // pred_check
          %p191 = pneg %p84
        $region38: #{tpu_custom_call.1} parent=35 // pred_check_branch
          %193 = sbr.rel (%p191) target = $region40
        $region39: #{tpu_custom_call.1} parent=35 // pred_region
          %s194 = sand.u32 %s69, 1
          %s195 = scalar_lea.sflag [#allocation4], %s194
          %s196 = sand.u32 %s69, 1
          %s197 = smul.addr %s196, 8
          %s198 = scalar_lea.vmem [#allocation5], %s197
          %200 = dma.done %s195, 128
        $region40: #{tpu_custom_call.1} parent=35 // pred_fallthru
          _
      $region36: #{tpu_custom_call.1} parent=5 // pred_fallthru
        _
    $region6: #{tpu_custom_call.1} parent=1 // loop_footer
      %s17 = sadd.s32 1, %s13
    $region7: #{tpu_custom_call.1} parent=1 // loop_footer_branch
      %12 = sbr.rel target = $region3
    $region8: #{tpu_custom_call.1} parent=1 // loop_exit
      _
    %201 = vsyncpa [#allocation3], 1
    %s202 = scalar_lea.sflag [#allocation3], 1
    %203 = vsyncpa %s202, 1
    %204 = vsyncpa [#allocation4], 1
    %s205 = scalar_lea.sflag [#allocation4], 1
    %206 = vsyncpa %s205, 1

</llo_original>
